<compile_context>
chip_gen: v6e
topology: v6e:2x2x1
jax: 0.10.0
libtpu: 0.0.40
codegen_flags: <defaults>
</compile_context>

<pallas_src>
import functools
import math

import jax
import jax.numpy as jnp
from jax import lax
from jax.experimental import pallas as pl
from jax.experimental.pallas import tpu as pltpu


# ----------------------------------------------------------------------------
# VMEM budgeting / tile selection
# ----------------------------------------------------------------------------

def _vmem_capacity_bytes():
    try:
        return int(pltpu.get_tpu_info().vmem_capacity_bytes)
    except Exception:
        # Conservative default = v7x per-TensorCore VMEM.
        return 64 * 1024 * 1024


def _vmem_need_bytes(t, cin, cout, scale, in_bytes, out_bytes):
    f32 = 4
    x_blk = 2 * cin * t * in_bytes                       # double-buffered input
    o_blk = 2 * cout * t * scale * scale * out_bytes     # double-buffered output
    w_res = (cout + 1) * cin * in_bytes                  # resident weight (1 buf)
    vecs = 3 * (cout + 1) * 128 * f32                    # lane-padded param vecs
    temps = 3 * (cout + 1) * t * f32                     # f32 y / centered / sq
    return x_blk + o_blk + w_res + vecs + temps


def _choose_tile(hw, w_img, cin, cout, scale, in_bytes, out_bytes, batch,
                 budget, *, max_rows=32, max_tile=4096):
    """Pick the flat spatial tile (lane dim of the x block).

    The tile must be a multiple of 128 (or the full extent) for the BlockSpec
    constraint, and additionally a multiple of W (whole image rows) when the
    nearest-upsample is fused into the store path.
    """
    if scale > 1:
        unit = (w_img * 128) // math.gcd(w_img, 128)     # lcm(W, 128)
    else:
        unit = 128

    if hw <= unit:
        t = hw                                           # full extent is legal
    else:
        t = min(max_tile, hw)
        t = max(unit, (t // unit) * unit)
        # Fit the per-chip VMEM budget (64 MiB/TC on v7x, 128 MiB on v5e/v6e).
        while t > unit and _vmem_need_bytes(t, cin, cout, scale, in_bytes,
                                            out_bytes) > budget:
            t -= unit
        # Best effort: >= 8 grid steps so both v7x TensorCores get a filled
        # double-buffer pipeline (harmless on single-TC v5e/v6e).
        while t > unit and batch * ((hw + t - 1) // t) < 8:
            nt = ((t // 2) // unit) * unit
            if nt < unit:
                break
            t = nt

    if scale > 1 and (t // w_img) > max_rows:
        # The unrolled per-row expansion would get too long; caller skips fusion.
        return None
    return t


# ----------------------------------------------------------------------------
# Kernel
# ----------------------------------------------------------------------------

def _linear_ln_upsample_kernel(x_ref, w_ref, b_ref, g_ref, beta_ref, o_ref, *,
                               cout, inv_c, eps, w_img, rows, scale,
                               bf16_matmul):
    # x_ref    : (1, Cin, T)      spatial tile, channels-first, native dtype
    # w_ref    : (Cout+1, Cin)    Linear weight + extra row of column sums
    # b_ref    : (Cout+1, 1)      Linear bias + extra entry sum(bias)
    # g_ref    : (Cout, 1)        LayerNorm weight
    # beta_ref : (Cout, 1)        LayerNorm bias
    # o_ref    : (1, Cout, T*scale^2)   (T when scale == 1)
    x = x_ref[0]                                    # (Cin, T)
    w = w_ref[...]                                  # (Cout+1, Cin)
    if bf16_matmul:
        x = x.astype(jnp.bfloat16)
        w = w.astype(jnp.bfloat16)

    # Linear (+ channel-sum row), f32 accumulation on the MXU.  Row `cout` of
    # y_all equals Cout * mean_channels(W x + b) because the augmented weight
    # row holds the column sums and the augmented bias holds sum(bias).
    y_all = jnp.dot(w, x, preferred_element_type=jnp.float32)
    y_all = y_all + b_ref[...].astype(jnp.float32)  # (Cout+1, T)

    y = y_all[:cout, :]                             # (Cout, T) linear output
    mu = y_all[cout:cout + 1, :] * inv_c            # (1, T)   channel mean (free)
    c = y - mu
    var = jnp.sum(c * c, axis=0, keepdims=True) * inv_c   # two-pass, no cancel
    rstd = lax.rsqrt(var + eps)
    out = c * rstd * g_ref[...].astype(jnp.float32) + beta_ref[...].astype(jnp.float32)

    if scale == 1:
        o_ref[0] = out.astype(o_ref.dtype)
        return

    # Fused nearest-neighbour upsample of the (rows, W) spatial tile:
    #   * W-direction repeat = matmul with a constant 0/1 expansion matrix
    #     (no lane-interleave reshapes; extra MXU work ~ scale*W/Cin of the
    #     main matmul, hidden in this memory-bound kernel),
    #   * H-direction repeat = `scale` stores of the same expanded row into the
    #     flat (Cout, T*scale^2) output block.
    q = lax.broadcasted_iota(jnp.int32, (w_img, w_img * scale), 1)
    p = lax.broadcasted_iota(jnp.int32, (w_img, w_img * scale), 0)
    expand = (q // scale == p).astype(jnp.float32)         # (W, W*scale)

    for r in range(rows):
        row = out[:, r * w_img:(r + 1) * w_img]            # (Cout, W)
        roww = jnp.dot(row, expand,
                       preferred_element_type=jnp.float32).astype(o_ref.dtype)
        for dr in range(scale):
            start = (r * scale + dr) * w_img * scale
            o_ref[0, :, start:start + w_img * scale] = roww


# ----------------------------------------------------------------------------
# pallas_call builder
# ----------------------------------------------------------------------------

def _linear_ln_upsample_call(x_flat, w_aug, b_aug, g2, be2, *, w_img, scale, t,
                             eps, single_buffer_params, vmem_limit_bytes,
                             bf16_matmul):
    batch, cin, hw = x_flat.shape
    cout = w_aug.shape[0] - 1
    n_hw = pl.cdiv(hw, t)                 # partial tail tile -> masked stores
    rows = t // w_img if scale > 1 else 0
    out_t = t * scale * scale
    out_hw = hw * scale * scale

    kernel = functools.partial(
        _linear_ln_upsample_kernel, cout=cout, inv_c=1.0 / cout, eps=eps,
        w_img=w_img, rows=rows, scale=scale, bf16_matmul=bf16_matmul)

    const_kw = {}
    if single_buffer_params:
        # Grid-invariant operands: one VMEM copy is enough (the default double
        # buffering would otherwise duplicate the resident weight).
        const_kw = dict(pipeline_mode=pl.Buffered(1))

    in_specs = [
        pl.BlockSpec((1, cin, t), lambda b, i: (b, 0, i)),               # x tile
        pl.BlockSpec((cout + 1, cin), lambda b, i: (0, 0), **const_kw),  # weight
        pl.BlockSpec((cout + 1, 1), lambda b, i: (0, 0), **const_kw),    # bias
        pl.BlockSpec((cout, 1), lambda b, i: (0, 0), **const_kw),        # ln gamma
        pl.BlockSpec((cout, 1), lambda b, i: (0, 0), **const_kw),        # ln beta
    ]

    return pl.pallas_call(
        kernel,
        out_shape=jax.ShapeDtypeStruct((batch, cout, out_hw), x_flat.dtype),
        grid_spec=pltpu.PrefetchScalarGridSpec(
            num_scalar_prefetch=0,
            grid=(batch, n_hw),
            in_specs=in_specs,
            out_specs=pl.BlockSpec((1, cout, out_t), lambda b, i: (b, 0, i)),
        ),
        compiler_params=pltpu.CompilerParams(
            dimension_semantics=("parallel", "parallel"),
            vmem_limit_bytes=vmem_limit_bytes,
        ),
    )(x_flat, w_aug, b_aug, g2, be2)


# ----------------------------------------------------------------------------
# Module forward
# ----------------------------------------------------------------------------

def upsample_convnext_forward(x_nchw, params, *, ratio, eps=1e-6,
                              fuse_upsample="auto", bf16_matmul=False):
    """Forward pass matching the PyTorch UpSampleConvnext module.

    x_nchw: (B, Cin, H, W) -> (B, Cout, H * 2**ratio, W * 2**ratio)
    """
    batch, cin, h_img, w_img = x_nchw.shape
    scale = 2 ** ratio
    weight, bias, gamma, beta = (params["lin_w"], params["lin_b"],
                                 params["ln_w"], params["ln_b"])
    cout = weight.shape[0]

    # Augment weight with a column-sum row and bias with its sum so the LN mean
    # is produced by the main matmul.
    w_sum = jnp.sum(weight.astype(jnp.float32), axis=0,
                    keepdims=True).astype(weight.dtype)
    w_aug = jnp.concatenate([weight, w_sum], axis=0)                 # (Cout+1, Cin)
    if bf16_matmul and w_aug.dtype == jnp.float32:
        w_aug = w_aug.astype(jnp.bfloat16)   # halves weight DMA; f32 accumulation
    b_aug = jnp.concatenate([bias, jnp.sum(bias, keepdims=True)]
                            ).reshape(cout + 1, 1)
    g2 = gamma.reshape(cout, 1)
    be2 = beta.reshape(cout, 1)

    x_flat = x_nchw.reshape(batch, cin, h_img * w_img)   # contiguous, no transpose
    hw = h_img * w_img
    in_bytes = x_flat.dtype.itemsize
    out_bytes = in_bytes

    cap = _vmem_capacity_bytes()
    budget = int(0.55 * cap)
    vmem_limit = int(0.85 * cap)

    attempts = []   # (scale folded into kernel, tile, single-buffer params)
    if scale > 1 and fuse_upsample in ("auto", True):
        t_f = _choose_tile(hw, w_img, cin, cout, scale, in_bytes, out_bytes,
                           batch, budget)
        if t_f is not None:
            attempts.append((scale, t_f, True))
            attempts.append((scale, t_f, False))
    if fuse_upsample is not True or scale == 1:
        t_u = _choose_tile(hw, w_img, cin, cout, 1, in_bytes, out_bytes,
                           batch, budget)
        attempts.append((1, t_u, True))
        attempts.append((1, t_u, False))

    last_err = None
    for call_scale, t, single_buf in attempts:
        try:
            out = _linear_ln_upsample_call(
                x_flat, w_aug, b_aug, g2, be2, w_img=w_img, scale=call_scale,
                t=t, eps=eps, single_buffer_params=single_buf,
                vmem_limit_bytes=vmem_limit, bf16_matmul=bf16_matmul)
        except Exception as e:
            # Mosaic support for the fused store path / Buffered(1) can vary by
            # version; degrade to the simpler, previously-proven configuration.
            last_err = e
            continue
        if call_scale > 1:
            # Output was written already-upsampled and flat; reshape is free.
            return out.reshape(batch, cout, h_img * scale, w_img * scale)
        y = out.reshape(batch, cout, h_img, w_img)
        if scale > 1:
            # Unfused fallback: one XLA broadcast pass for the nearest upsample.
            y = jnp.broadcast_to(y[:, :, :, None, :, None],
                                 (batch, cout, h_img, scale, w_img, scale))
            y = y.reshape(batch, cout, h_img * scale, w_img * scale)
        return y
    raise last_err


# ----------------------------------------------------------------------------
# Parameters / pure-JAX reference
# ----------------------------------------------------------------------------

def init_params(key, inchannel, outchannel, dtype=jnp.float32):
    """Deterministic parameter init mirroring nn.Linear / LayerNorm defaults."""
    k_w, k_b = jax.random.split(key)
    bound = 1.0 / jnp.sqrt(jnp.array(inchannel, dtype=jnp.float32))
    lin_w = jax.random.uniform(k_w, (outchannel, inchannel), dtype, -bound, bound)
    lin_b = jax.random.uniform(k_b, (outchannel,), dtype, -bound, bound)
    ln_w = jnp.ones((outchannel,), dtype)
    ln_b = jnp.zeros((outchannel,), dtype)
    return {"lin_w": lin_w, "lin_b": lin_b, "ln_w": ln_w, "ln_b": ln_b}


def reference_forward(x_nchw, params, *, ratio):
    """Pure-JAX reference mirroring the PyTorch code path."""
    x = jnp.transpose(x_nchw, (0, 2, 3, 1))
    y = x @ params["lin_w"].T + params["lin_b"]
    mu = jnp.mean(y, axis=-1, keepdims=True)
    var = jnp.mean((y - mu) ** 2, axis=-1, keepdims=True)
    y = (y - mu) / jnp.sqrt(var + 1e-6)
    y = y * params["ln_w"] + params["ln_b"]
    y = jnp.transpose(y, (0, 3, 1, 2))
    s = 2 ** ratio
    return jnp.repeat(jnp.repeat(y, s, axis=2), s, axis=3)


if __name__ == "__main__":
    key = jax.random.PRNGKey(0)
    k_x, k_p = jax.random.split(key)

    B, Cin, H, W = 2, 4, 16, 16
    Cout = 8
    ratio = 1  # nearest upsample scale = 2**ratio = 2

    x = jax.random.normal(k_x, (B, Cin, H, W), jnp.float32)
    params = init_params(k_p, Cin, Cout)

    out = upsample_convnext_forward(x, params, ratio=ratio)
    out = jax.block_until_ready(out)

    ref = jax.block_until_ready(reference_forward(x, params, ratio=ratio))

    assert out.shape == (B, Cout, H * 2 ** ratio, W * 2 ** ratio), out.shape
    err = float(jnp.max(jnp.abs(out - ref)))
    assert jnp.allclose(out, ref, atol=1e-4, rtol=1e-4), err

    print("KERNEL_OK")
</pallas_src>

<mosaic_0001>
module attributes {stable_mosaic.version = 11 : i64} {
  func.func @_linear_ln_upsample_kernel(%arg0: i32, %arg1: i32, %arg2: memref<1x4x128xf32, #tpu.memory_space<vmem>>, %arg3: memref<9x4xf32, #tpu.memory_space<vmem>>, %arg4: memref<9x1xf32, #tpu.memory_space<vmem>>, %arg5: memref<8x1xf32, #tpu.memory_space<vmem>>, %arg6: memref<8x1xf32, #tpu.memory_space<vmem>>, %arg7: memref<1x8x128xf32, #tpu.memory_space<vmem>>) attributes {dimension_semantics = [#tpu.dimension_semantics<parallel>, #tpu.dimension_semantics<parallel>], iteration_bounds = array<i64: 2, 2>, scalar_prefetch = 0 : i64, scratch_operands = 0 : i64, tpu.core_type = #tpu.core_type<tc>, window_params = [{transform_indices = @transform_0, window_bounds = array<i64: 1, 4, 128>}, {pipeline_mode = #tpu.pipeline_mode<synchronous>, transform_indices = @transform_1, window_bounds = array<i64: 9, 4>}, {pipeline_mode = #tpu.pipeline_mode<synchronous>, transform_indices = @transform_2, window_bounds = array<i64: 9, 1>}, {pipeline_mode = #tpu.pipeline_mode<synchronous>, transform_indices = @transform_3, window_bounds = array<i64: 8, 1>}, {pipeline_mode = #tpu.pipeline_mode<synchronous>, transform_indices = @transform_4, window_bounds = array<i64: 8, 1>}, {transform_indices = @transform_5, window_bounds = array<i64: 1, 8, 128>}]} {
    %c0 = arith.constant 0 : index
    %c0_0 = arith.constant 0 : index
    %c0_1 = arith.constant 0 : index
    %0 = vector.load %arg2[%c0, %c0_0, %c0_1] : memref<1x4x128xf32, #tpu.memory_space<vmem>>, vector<1x4x128xf32>
    %1 = vector.shape_cast %0 : vector<1x4x128xf32> to vector<4x128xf32>
    %c0_2 = arith.constant 0 : index
    %c0_3 = arith.constant 0 : index
    %2 = vector.load %arg3[%c0_2, %c0_3] : memref<9x4xf32, #tpu.memory_space<vmem>>, vector<9x4xf32>
    %cst = arith.constant dense<0.000000e+00> : vector<9x128xf32>
    %3 = tpu.matmul %2, %1, %cst {dimension_numbers = #tpu.dot_dimension_numbers<[1], [0], [0], [1], [0, 0, 1, 1], [], []>} : vector<9x4xf32>, vector<4x128xf32>, vector<9x128xf32> -> vector<9x128xf32>
    %c0_4 = arith.constant 0 : index
    %c0_5 = arith.constant 0 : index
    %4 = vector.load %arg4[%c0_4, %c0_5] : memref<9x1xf32, #tpu.memory_space<vmem>>, vector<9x1xf32>
    %5 = vector.broadcast %4 : vector<9x1xf32> to vector<9x128xf32>
    %6 = arith.addf %3, %5 : vector<9x128xf32>
    %7 = vector.extract_strided_slice %6 {offsets = [0, 0], sizes = [8, 128], strides = [1, 1]} : vector<9x128xf32> to vector<8x128xf32>
    %8 = vector.extract_strided_slice %6 {offsets = [8, 0], sizes = [1, 128], strides = [1, 1]} : vector<9x128xf32> to vector<1x128xf32>
    %cst_6 = arith.constant 1.250000e-01 : f32
    %9 = vector.broadcast %cst_6 : f32 to vector<1x128xf32>
    %10 = arith.mulf %8, %9 : vector<1x128xf32>
    %11 = vector.broadcast %10 : vector<1x128xf32> to vector<8x128xf32>
    %12 = arith.subf %7, %11 : vector<8x128xf32>
    %13 = arith.mulf %12, %12 : vector<8x128xf32>
    %cst_7 = arith.constant dense<0.000000e+00> : vector<128xf32>
    %14 = vector.multi_reduction <add>, %13, %cst_7 [0] : vector<8x128xf32> to vector<128xf32>
    %15 = vector.shape_cast %14 : vector<128xf32> to vector<1x128xf32>
    %cst_8 = arith.constant 1.250000e-01 : f32
    %16 = vector.broadcast %cst_8 : f32 to vector<1x128xf32>
    %17 = arith.mulf %15, %16 : vector<1x128xf32>
    %cst_9 = arith.constant 9.99999997E-7 : f32
    %18 = vector.broadcast %cst_9 : f32 to vector<1x128xf32>
    %19 = arith.addf %17, %18 : vector<1x128xf32>
    %20 = math.rsqrt %19 : vector<1x128xf32>
    %21 = vector.broadcast %20 : vector<1x128xf32> to vector<8x128xf32>
    %22 = arith.mulf %12, %21 : vector<8x128xf32>
    %c0_10 = arith.constant 0 : index
    %c0_11 = arith.constant 0 : index
    %23 = vector.load %arg5[%c0_10, %c0_11] : memref<8x1xf32, #tpu.memory_space<vmem>>, vector<8x1xf32>
    %24 = vector.broadcast %23 : vector<8x1xf32> to vector<8x128xf32>
    %25 = arith.mulf %22, %24 : vector<8x128xf32>
    %c0_12 = arith.constant 0 : index
    %c0_13 = arith.constant 0 : index
    %26 = vector.load %arg6[%c0_12, %c0_13] : memref<8x1xf32, #tpu.memory_space<vmem>>, vector<8x1xf32>
    %27 = vector.broadcast %26 : vector<8x1xf32> to vector<8x128xf32>
    %28 = arith.addf %25, %27 : vector<8x128xf32>
    %c0_14 = arith.constant 0 : index
    %c0_15 = arith.constant 0 : index
    %c0_16 = arith.constant 0 : index
    %29 = vector.load %arg7[%c0_14, %c0_15, %c0_16] : memref<1x8x128xf32, #tpu.memory_space<vmem>>, vector<1x8x128xf32>
    %30 = vector.shape_cast %29 : vector<1x8x128xf32> to vector<8x128xf32>
    %31 = vector.shape_cast %28 : vector<8x128xf32> to vector<1x8x128xf32>
    tpu.vector_store %arg7[%c0_14, %c0_15, %c0_16], %31 {strides = array<i32>} : memref<1x8x128xf32, #tpu.memory_space<vmem>>, vector<1x8x128xf32>,
    return
  }
  func.func @transform_0(%arg0: i32, %arg1: i32) -> (i32, i32, i32) {
    %c0_i32 = arith.constant 0 : i32
    %c0_i32_0 = arith.constant 0 : i32
    return %arg0, %c0_i32, %arg1 : i32, i32, i32
  }
  func.func @transform_1(%arg0: i32, %arg1: i32) -> (i32, i32) {
    %c0_i32 = arith.constant 0 : i32
    %c0_i32_0 = arith.constant 0 : i32
    %c0_i32_1 = arith.constant 0 : i32
    return %c0_i32, %c0_i32_0 : i32, i32
  }
  func.func @transform_2(%arg0: i32, %arg1: i32) -> (i32, i32) {
    %c0_i32 = arith.constant 0 : i32
    %c0_i32_0 = arith.constant 0 : i32
    %c0_i32_1 = arith.constant 0 : i32
    return %c0_i32, %c0_i32_0 : i32, i32
  }
  func.func @transform_3(%arg0: i32, %arg1: i32) -> (i32, i32) {
    %c0_i32 = arith.constant 0 : i32
    %c0_i32_0 = arith.constant 0 : i32
    %c0_i32_1 = arith.constant 0 : i32
    return %c0_i32, %c0_i32_0 : i32, i32
  }
  func.func @transform_4(%arg0: i32, %arg1: i32) -> (i32, i32) {
    %c0_i32 = arith.constant 0 : i32
    %c0_i32_0 = arith.constant 0 : i32
    %c0_i32_1 = arith.constant 0 : i32
    return %c0_i32, %c0_i32_0 : i32, i32
  }
  func.func @transform_5(%arg0: i32, %arg1: i32) -> (i32, i32, i32) {
    %c0_i32 = arith.constant 0 : i32
    %c0_i32_0 = arith.constant 0 : i32
    return %arg0, %c0_i32, %arg1 : i32, i32, i32
  }
}

module attributes {stable_mosaic.version = 11 : i64} {
  func.func @_linear_ln_upsample_kernel(%arg0: i32, %arg1: i32, %arg2: memref<1x4x128xf32, #tpu.memory_space<vmem>>, %arg3: memref<9x4xf32, #tpu.memory_space<vmem>>, %arg4: memref<9x1xf32, #tpu.memory_space<vmem>>, %arg5: memref<8x1xf32, #tpu.memory_space<vmem>>, %arg6: memref<8x1xf32, #tpu.memory_space<vmem>>, %arg7: memref<1x8x128xf32, #tpu.memory_space<vmem>>) attributes {dimension_semantics = [#tpu.dimension_semantics<parallel>, #tpu.dimension_semantics<parallel>], iteration_bounds = array<i64: 2, 2>, scalar_prefetch = 0 : i64, scratch_operands = 0 : i64, tpu.core_type = #tpu.core_type<tc>, window_params = [{transform_indices = @transform_0, window_bounds = array<i64: 1, 4, 128>}, {pipeline_mode = #tpu.pipeline_mode<synchronous>, transform_indices = @transform_1, window_bounds = array<i64: 9, 4>}, {pipeline_mode = #tpu.pipeline_mode<synchronous>, transform_indices = @transform_2, window_bounds = array<i64: 9, 1>}, {pipeline_mode = #tpu.pipeline_mode<synchronous>, transform_indices = @transform_3, window_bounds = array<i64: 8, 1>}, {pipeline_mode = #tpu.pipeline_mode<synchronous>, transform_indices = @transform_4, window_bounds = array<i64: 8, 1>}, {transform_indices = @transform_5, window_bounds = array<i64: 1, 8, 128>}]} {
    %c0 = arith.constant 0 : index
    %c0_0 = arith.constant 0 : index
    %c0_1 = arith.constant 0 : index
    %0 = vector.load %arg2[%c0, %c0_0, %c0_1] : memref<1x4x128xf32, #tpu.memory_space<vmem>>, vector<1x4x128xf32>
    %1 = vector.shape_cast %0 : vector<1x4x128xf32> to vector<4x128xf32>
    %c0_2 = arith.constant 0 : index
    %c0_3 = arith.constant 0 : index
    %2 = vector.load %arg3[%c0_2, %c0_3] : memref<9x4xf32, #tpu.memory_space<vmem>>, vector<9x4xf32>
    %cst = arith.constant dense<0.000000e+00> : vector<9x128xf32>
    %3 = tpu.matmul %2, %1, %cst {dimension_numbers = #tpu.dot_dimension_numbers<[1], [0], [0], [1], [0, 0, 1, 1], [], []>} : vector<9x4xf32>, vector<4x128xf32>, vector<9x128xf32> -> vector<9x128xf32>
    %c0_4 = arith.constant 0 : index
    %c0_5 = arith.constant 0 : index
    %4 = vector.load %arg4[%c0_4, %c0_5] : memref<9x1xf32, #tpu.memory_space<vmem>>, vector<9x1xf32>
    %5 = vector.broadcast %4 : vector<9x1xf32> to vector<9x128xf32>
    %6 = arith.addf %3, %5 : vector<9x128xf32>
    %7 = vector.extract_strided_slice %6 {offsets = [0, 0], sizes = [8, 128], strides = [1, 1]} : vector<9x128xf32> to vector<8x128xf32>
    %8 = vector.extract_strided_slice %6 {offsets = [8, 0], sizes = [1, 128], strides = [1, 1]} : vector<9x128xf32> to vector<1x128xf32>
    %cst_6 = arith.constant 1.250000e-01 : f32
    %9 = vector.broadcast %cst_6 : f32 to vector<1x128xf32>
    %10 = arith.mulf %8, %9 : vector<1x128xf32>
    %11 = vector.broadcast %10 : vector<1x128xf32> to vector<8x128xf32>
    %12 = arith.subf %7, %11 : vector<8x128xf32>
    %13 = arith.mulf %12, %12 : vector<8x128xf32>
    %cst_7 = arith.constant dense<0.000000e+00> : vector<128xf32>
    %14 = vector.multi_reduction <add>, %13, %cst_7 [0] : vector<8x128xf32> to vector<128xf32>
    %15 = vector.shape_cast %14 : vector<128xf32> to vector<1x128xf32>
    %cst_8 = arith.constant 1.250000e-01 : f32
    %16 = vector.broadcast %cst_8 : f32 to vector<1x128xf32>
    %17 = arith.mulf %15, %16 : vector<1x128xf32>
    %cst_9 = arith.constant 9.99999997E-7 : f32
    %18 = vector.broadcast %cst_9 : f32 to vector<1x128xf32>
    %19 = arith.addf %17, %18 : vector<1x128xf32>
    %20 = math.rsqrt %19 : vector<1x128xf32>
    %21 = vector.broadcast %20 : vector<1x128xf32> to vector<8x128xf32>
    %22 = arith.mulf %12, %21 : vector<8x128xf32>
    %c0_10 = arith.constant 0 : index
    %c0_11 = arith.constant 0 : index
    %23 = vector.load %arg5[%c0_10, %c0_11] : memref<8x1xf32, #tpu.memory_space<vmem>>, vector<8x1xf32>
    %24 = vector.broadcast %23 : vector<8x1xf32> to vector<8x128xf32>
    %25 = arith.mulf %22, %24 : vector<8x128xf32>
    %c0_12 = arith.constant 0 : index
    %c0_13 = arith.constant 0 : index
    %26 = vector.load %arg6[%c0_12, %c0_13] : memref<8x1xf32, #tpu.memory_space<vmem>>, vector<8x1xf32>
    %27 = vector.broadcast %26 : vector<8x1xf32> to vector<8x128xf32>
    %28 = arith.addf %25, %27 : vector<8x128xf32>
    %c0_14 = arith.constant 0 : index
    %c0_15 = arith.constant 0 : index
    %c0_16 = arith.constant 0 : index
    %29 = vector.load %arg7[%c0_14, %c0_15, %c0_16] : memref<1x8x128xf32, #tpu.memory_space<vmem>>, vector<1x8x128xf32>
    %30 = vector.shape_cast %29 : vector<1x8x128xf32> to vector<8x128xf32>
    %31 = vector.shape_cast %28 : vector<8x128xf32> to vector<1x8x128xf32>
    tpu.vector_store %arg7[%c0_14, %c0_15, %c0_16], %31 {strides = array<i32>} : memref<1x8x128xf32, #tpu.memory_space<vmem>>, vector<1x8x128xf32>,
    return
  }
  func.func @transform_0(%arg0: i32, %arg1: i32) -> (i32, i32, i32) {
    %c0_i32 = arith.constant 0 : i32
    %c0_i32_0 = arith.constant 0 : i32
    return %arg0, %c0_i32, %arg1 : i32, i32, i32
  }
  func.func @transform_1(%arg0: i32, %arg1: i32) -> (i32, i32) {
    %c0_i32 = arith.constant 0 : i32
    %c0_i32_0 = arith.constant 0 : i32
    %c0_i32_1 = arith.constant 0 : i32
    return %c0_i32, %c0_i32_0 : i32, i32
  }
  func.func @transform_2(%arg0: i32, %arg1: i32) -> (i32, i32) {
    %c0_i32 = arith.constant 0 : i32
    %c0_i32_0 = arith.constant 0 : i32
    %c0_i32_1 = arith.constant 0 : i32
    return %c0_i32, %c0_i32_0 : i32, i32
  }
  func.func @transform_3(%arg0: i32, %arg1: i32) -> (i32, i32) {
    %c0_i32 = arith.constant 0 : i32
    %c0_i32_0 = arith.constant 0 : i32
    %c0_i32_1 = arith.constant 0 : i32
    return %c0_i32, %c0_i32_0 : i32, i32
  }
  func.func @transform_4(%arg0: i32, %arg1: i32) -> (i32, i32) {
    %c0_i32 = arith.constant 0 : i32
    %c0_i32_0 = arith.constant 0 : i32
    %c0_i32_1 = arith.constant 0 : i32
    return %c0_i32, %c0_i32_0 : i32, i32
  }
  func.func @transform_5(%arg0: i32, %arg1: i32) -> (i32, i32, i32) {
    %c0_i32 = arith.constant 0 : i32
    %c0_i32_0 = arith.constant 0 : i32
    return %arg0, %c0_i32, %arg1 : i32, i32, i32
  }
}

</mosaic_0001>

<llo_original>
// kernel: tpu_custom_call.1
$region0: #{tpu_custom_call.1}
  #allocation0 [shape = 'u32[]', space=smem, size = 0x4, offset = 0x4, fixed_abs, tag = 'smem constant byte address 0x4 - core index']
  #allocation1 [shape = 'u32[144,128]{1,0:T(1,128)}', space=vmem, size = 0x12000, scoped, tag = 'internal scratch']
  %s0 = inlined_call_operand.vmem [shape: f32[2,4,256], index: 0, kind: input, shape index: {}]
  %s1 = inlined_call_operand.vmem [shape: f32[9,4], index: 1, kind: input, shape index: {}]
  %s2 = inlined_call_operand.vmem [shape: f32[9,1], index: 2, kind: input, shape index: {}]
  %s3 = inlined_call_operand.vmem [shape: f32[8,1], index: 3, kind: input, shape index: {}]
  %s4 = inlined_call_operand.vmem [shape: f32[8,1], index: 4, kind: input, shape index: {}]
  %s5 = inlined_call_operand.hbm [shape: f32[2,8,256], index: 5, kind: output, shape index: {}]
  %s6 = sld [smem:[#allocation0]]
  $region53: #{tpu_custom_call.1} parent=0
    _
  %s8 = ssub.s32 1, %s6
  %s9 = scalar_select 0, %s8, %s6
  $region1: #{tpu_custom_call.1} parent=0
    #allocation2 [shape = 'u8[8192]{0}', space=vmem, size = 0x2000, scoped, tag = 'output window, operand 0']
    #allocation3 [shape = 's32[2]{0}', space=sflag, size = 0x8, scoped, tag = 'scoped memory for tpu_custom_call.1']
    %10 = vsyncpa [#allocation3], 0
    %s11 = scalar_lea.sflag [#allocation3], 1
    %12 = vsyncpa %s11, 0
    loop: start=0, step=1, limit=6
    $region2: #{tpu_custom_call.1} parent=1 // loop_pre_header
      _
    $region3: #{tpu_custom_call.1} parent=1 // loop_header
      %s14 = sphi 0, %s18
      %p15 = scmp.ge.s32.totalorder %s14, 6
      %s21 = sphi 0, %s33
      %s22 = sphi 0, %s29
      %s23 = sphi 0, %s21
      %s24 = sphi 0, %s22
      %s25 = sphi 0, %s23
      %s26 = sphi 0, %s24
      %s38 = sphi 0, %s40
      %s41 = sphi 0, %s38
      %s42 = sphi 0, %s41
      %s58 = sphi 0, %s42
      %s62 = sphi 0, %s62
      %s64 = sphi 0, %s62
      %s65 = sphi 0, %s64
      %s79 = sphi 0, %s65
      %s83 = sphi 0, %s83
      %s85 = sphi 0, %s83
      %s86 = sphi 0, %s85
      %s100 = sphi 0, %s86
      %s104 = sphi 0, %s104
      %s106 = sphi 0, %s104
      %s107 = sphi 0, %s106
      %s121 = sphi 0, %s107
      %s125 = sphi 0, %s125
      %s127 = sphi 0, %s125
      %s128 = sphi 0, %s127
      %s142 = sphi 0, %s128
      %s150 = sphi 0, %s152
      %s153 = sphi 0, %s150
      %s154 = sphi 0, %s153
      %s170 = sphi 0, %s154
    $region4: #{tpu_custom_call.1} parent=1 // loop_header_branch
      %17 = sbr.rel (%p15) target = $region8
    $region5: #{tpu_custom_call.1} parent=1 // loop_body
      %s19 = ssub.s32 %s14, 1
      %s20 = ssub.s32 %s14, 2
      %s27 = sadd.s32 1, %s22
      %p28 = scmp.ge.s32.totalorder %s27, 2
      %s29 = scalar_select %p28, 0, %s27
      %s30 = sadd.s32 1, %s21
      %s31 = scalar_select %p28, %s30, %s21
      %p32 = scmp.ge.s32.totalorder %s31, 2
      %s33 = scalar_select %p32, 0, %s31
      %s34 = ssub.s32 %s21, %s33
      %s35 = ssub.s32 %s22, %s29
      %s36 = sor.u32 %s34, %s35
      %p37 = scmp.eq.s32.totalorder %s36, 0
      %s39 = sadd.s32 %s38, 1
      %s40 = scalar_select %p37, %s38, %s39
      %p43 = pneg %p37
      %p44 = scmp.eq.s32.totalorder %s14, 3
      %p45 = por %p43, %p44
      %p46 = scmp.ne.s32.totalorder %s38, %s41
      %p47 = scmp.eq.s32.totalorder %s14, 0
      %p48 = por %p46, %p47
      %p49 = scmp.ne.s32.totalorder %s38, %s41
      %p50 = scmp.eq.s32.totalorder %s19, 3
      %p51 = por %p49, %p50
      %p52 = scmp.ne.s32.totalorder %s41, %s42
      %p53 = scmp.eq.s32.totalorder %s19, 0
      %p54 = por %p52, %p53
      %p55 = scmp.ne.s32.totalorder %s41, %s42
      %p56 = scmp.eq.s32.totalorder %s20, 3
      %p57 = por %p55, %p56
      %p59 = scmp.ne.s32.totalorder %s42, %s58
      %p60 = scmp.eq.s32.totalorder %s20, 0
      %p61 = por %p59, %p60
      %s63 = sadd.s32 %s62, 1
      %p66 = scmp.eq.s32.totalorder %s14, 3
      %p67 = scmp.ne.s32.totalorder %s62, %s64
      %p68 = scmp.eq.s32.totalorder %s14, 0
      %p69 = por %p67, %p68
      %p70 = scmp.ne.s32.totalorder %s62, %s64
      %p71 = scmp.eq.s32.totalorder %s19, 3
      %p72 = por %p70, %p71
      %p73 = scmp.ne.s32.totalorder %s64, %s65
      %p74 = scmp.eq.s32.totalorder %s19, 0
      %p75 = por %p73, %p74
      %p76 = scmp.ne.s32.totalorder %s64, %s65
      %p77 = scmp.eq.s32.totalorder %s20, 3
      %p78 = por %p76, %p77
      %p80 = scmp.ne.s32.totalorder %s65, %s79
      %p81 = scmp.eq.s32.totalorder %s20, 0
      %p82 = por %p80, %p81
      %s84 = sadd.s32 %s83, 1
      %p87 = scmp.eq.s32.totalorder %s14, 3
      %p88 = scmp.ne.s32.totalorder %s83, %s85
      %p89 = scmp.eq.s32.totalorder %s14, 0
      %p90 = por %p88, %p89
      %p91 = scmp.ne.s32.totalorder %s83, %s85
      %p92 = scmp.eq.s32.totalorder %s19, 3
      %p93 = por %p91, %p92
      %p94 = scmp.ne.s32.totalorder %s85, %s86
      %p95 = scmp.eq.s32.totalorder %s19, 0
      %p96 = por %p94, %p95
      %p97 = scmp.ne.s32.totalorder %s85, %s86
      %p98 = scmp.eq.s32.totalorder %s20, 3
      %p99 = por %p97, %p98
      %p101 = scmp.ne.s32.totalorder %s86, %s100
      %p102 = scmp.eq.s32.totalorder %s20, 0
      %p103 = por %p101, %p102
      %s105 = sadd.s32 %s104, 1
      %p108 = scmp.eq.s32.totalorder %s14, 3
      %p109 = scmp.ne.s32.totalorder %s104, %s106
      %p110 = scmp.eq.s32.totalorder %s14, 0
      %p111 = por %p109, %p110
      %p112 = scmp.ne.s32.totalorder %s104, %s106
      %p113 = scmp.eq.s32.totalorder %s19, 3
      %p114 = por %p112, %p113
      %p115 = scmp.ne.s32.totalorder %s106, %s107
      %p116 = scmp.eq.s32.totalorder %s19, 0
      %p117 = por %p115, %p116
      %p118 = scmp.ne.s32.totalorder %s106, %s107
      %p119 = scmp.eq.s32.totalorder %s20, 3
      %p120 = por %p118, %p119
      %p122 = scmp.ne.s32.totalorder %s107, %s121
      %p123 = scmp.eq.s32.totalorder %s20, 0
      %p124 = por %p122, %p123
      %s126 = sadd.s32 %s125, 1
      %p129 = scmp.eq.s32.totalorder %s14, 3
      %p130 = scmp.ne.s32.totalorder %s125, %s127
      %p131 = scmp.eq.s32.totalorder %s14, 0
      %p132 = por %p130, %p131
      %p133 = scmp.ne.s32.totalorder %s125, %s127
      %p134 = scmp.eq.s32.totalorder %s19, 3
      %p135 = por %p133, %p134
      %p136 = scmp.ne.s32.totalorder %s127, %s128
      %p137 = scmp.eq.s32.totalorder %s19, 0
      %p138 = por %p136, %p137
      %p139 = scmp.ne.s32.totalorder %s127, %s128
      %p140 = scmp.eq.s32.totalorder %s20, 3
      %p141 = por %p139, %p140
      %p143 = scmp.ne.s32.totalorder %s128, %s142
      %p144 = scmp.eq.s32.totalorder %s20, 0
      %p145 = por %p143, %p144
      %s146 = ssub.s32 %s21, %s33
      %s147 = ssub.s32 %s22, %s29
      %s148 = sor.u32 %s146, %s147
      %p149 = scmp.eq.s32.totalorder %s148, 0
      %s151 = sadd.s32 %s150, 1
      %s152 = scalar_select %p149, %s150, %s151
      %p155 = pneg %p149
      %p156 = scmp.eq.s32.totalorder %s14, 3
      %p157 = por %p155, %p156
      %p158 = scmp.ne.s32.totalorder %s150, %s153
      %p159 = scmp.eq.s32.totalorder %s14, 0
      %p160 = por %p158, %p159
      %p161 = scmp.ne.s32.totalorder %s150, %s153
      %p162 = scmp.eq.s32.totalorder %s19, 3
      %p163 = por %p161, %p162
      %p164 = scmp.ne.s32.totalorder %s153, %s154
      %p165 = scmp.eq.s32.totalorder %s19, 0
      %p166 = por %p164, %p165
      %p167 = scmp.ne.s32.totalorder %s153, %s154
      %p168 = scmp.eq.s32.totalorder %s20, 3
      %p169 = por %p167, %p168
      %p171 = scmp.ne.s32.totalorder %s154, %s170
      %p172 = scmp.eq.s32.totalorder %s20, 0
      %p173 = por %p171, %p172
      %p174 = scmp.le.s32.totalorder 1, %s14
      %p175 = scmp.lt.s32.totalorder %s14, 5
      %p176 = pnand %p174, %p175
      %p177 = pneg %p176
      // Predicated region
      $region9: #{tpu_custom_call.1} parent=5 // pred_check
        _
      $region10: #{tpu_custom_call.1} parent=5 // pred_check_branch
        %179 = sbr.rel (%p176) target = $region12
      $region11: #{tpu_custom_call.1} parent=5 // pred_region
        %s180 = ssub.s32 %s14, 1
        // Predicated region
        $region13: #{tpu_custom_call.1} parent=11 // pred_check
          %p181 = pneg %p75
        $region14: #{tpu_custom_call.1} parent=11 // pred_check_branch
          %183 = sbr.rel (%p181) target = $region16
        $region15: #{tpu_custom_call.1} parent=11 // pred_region
          _
        $region16: #{tpu_custom_call.1} parent=11 // pred_fallthru
          _
        // Predicated region
        $region17: #{tpu_custom_call.1} parent=11 // pred_check
          %p184 = pneg %p96
        $region18: #{tpu_custom_call.1} parent=11 // pred_check_branch
          %186 = sbr.rel (%p184) target = $region20
        $region19: #{tpu_custom_call.1} parent=11 // pred_region
          _
        $region20: #{tpu_custom_call.1} parent=11 // pred_fallthru
          _
        // Predicated region
        $region21: #{tpu_custom_call.1} parent=11 // pred_check
          %p187 = pneg %p117
        $region22: #{tpu_custom_call.1} parent=11 // pred_check_branch
          %189 = sbr.rel (%p187) target = $region24
        $region23: #{tpu_custom_call.1} parent=11 // pred_region
          _
        $region24: #{tpu_custom_call.1} parent=11 // pred_fallthru
          _
        // Predicated region
        $region25: #{tpu_custom_call.1} parent=11 // pred_check
          %p190 = pneg %p138
        $region26: #{tpu_custom_call.1} parent=11 // pred_check_branch
          %192 = sbr.rel (%p190) target = $region28
        $region27: #{tpu_custom_call.1} parent=11 // pred_region
          _
        $region28: #{tpu_custom_call.1} parent=11 // pred_fallthru
          _
      $region12: #{tpu_custom_call.1} parent=5 // pred_fallthru
        _
      %p193 = scmp.lt.s32.totalorder %s14, 4
      // Predicated region
      $region29: #{tpu_custom_call.1} parent=5 // pred_check
        %p194 = pneg %p193
      $region30: #{tpu_custom_call.1} parent=5 // pred_check_branch
        %196 = sbr.rel (%p194) target = $region32
      $region31: #{tpu_custom_call.1} parent=5 // pred_region
        // Predicated region
        $region33: #{tpu_custom_call.1} parent=31 // pred_check
          %p197 = pneg %p48
        $region34: #{tpu_custom_call.1} parent=31 // pred_check_branch
          %199 = sbr.rel (%p197) target = $region36
        $region35: #{tpu_custom_call.1} parent=31 // pred_region
          %p200 = scmp.lt.s32.totalorder %s21, 1
          %s201 = scalar_select %p200, %s21, 1
          %p202 = scmp.lt.s32.totalorder %s22, 1
          %s203 = scalar_select %p202, %s22, 1
          %s204 = smul.addr %s201, 2
          %s205 = sadd.s32 %s203, %s204
          %s206 = smul.addr %s205, 4
          %s207 = scalar_lea.vmem %s0, %s206
        $region36: #{tpu_custom_call.1} parent=31 // pred_fallthru
          _
      $region32: #{tpu_custom_call.1} parent=5 // pred_fallthru
        _
      %p208 = scmp.le.s32.totalorder 1, %s14
      %p209 = scmp.lt.s32.totalorder %s14, 5
      %p210 = pnand %p208, %p209
      %p211 = pneg %p210
      // Predicated region
      $region37: #{tpu_custom_call.1} parent=5 // pred_check
        _
      $region38: #{tpu_custom_call.1} parent=5 // pred_check_branch
        %213 = sbr.rel (%p210) target = $region40
      $region39: #{tpu_custom_call.1} parent=5 // pred_region
        %s214 = ssub.s32 %s14, 1
        %p215 = scmp.lt.s32.totalorder %s23, 1
        %s216 = scalar_select %p215, %s23, 1
        %p217 = scmp.lt.s32.totalorder %s24, 1
        %s218 = scalar_select %p217, %s24, 1
        %s219 = smul.addr %s216, 2
        %s220 = sadd.s32 %s218, %s219
        %s221 = smul.addr %s220, 4
        %s222 = scalar_lea.vmem %s0, %s221
        %p223 = pneg %p54
        %p224 = pneg %p51
        %p225 = pneg %p75
        %p226 = pneg %p72
        %p227 = pneg %p96
        %p228 = pneg %p93
        %p229 = pneg %p117
        %p230 = pneg %p114
        %p231 = pneg %p138
        %p232 = pneg %p135
        %p233 = pneg %p166
        %p234 = pneg %p163
        %s235 = sand.u32 %s153, 1
        %s236 = scalar_lea.sflag [#allocation3], %s235
        %s237 = sand.u32 %s153, 1
        %s238 = smul.addr %s237, 8
        %s239 = scalar_lea.vmem [#allocation2], %s238
        %p240 = scmp.lt.s32.totalorder %s23, 1
        %s241 = scalar_select %p240, %s23, 1
        %p242 = scmp.lt.s32.totalorder %s24, 1
        %s243 = scalar_select %p242, %s24, 1
        %s244 = smul.addr %s241, 2
        %s245 = sadd.s32 %s243, %s244
        %s246 = smul.addr %s245, 4
        %s247 = scalar_lea.vmem %s0, %s246
        %v248 = vld [vmem:[%s247] sm:$0xf]
        %v249 = vld [vmem:[%s1] sm:$0xff]
        %v250 = vld [vmem:[%s1 + $0x8] sm:$0x1]
        %v251 = vld [vmem:[%s2] sm:$0xff]
        %v252 = vld [vmem:[%s2 + $0x8] sm:$0x1]
        %254 = vset.pattern.permute.xlu0 0
        %255 = vperm.xlu0 %254, %v251
        %v256 = vpop.permute.xlu0 %255
        %259 = vset.pattern.permute.xlu0 0
        %260 = vperm.xlu0 %259, %v252
        %v261 = vpop.permute.xlu0 %260
        %vm263 = vcmask 31744
        %v265 = vsel %vm263, %v249, 0
        %v268 = vsel %vm263, %v250, 0
        %vm270 = vcmask 1043456
        %v272 = vsel %vm270, %v248, 0
        %274 = vmatprep.subr.mxu0 0.0
        %275 = vmatpush1.msra.mxu0 0.0
        %276 = vmatprep.subr.mxu0 0.0
        %277 = vmatpush1.msra.mxu0 0.0
        %278 = vmatprep.subr.mxu0 0.0
        %279 = vmatpush1.msra.mxu0 0.0
        %280 = vmatprep.subr.mxu0 0.0
        %281 = vmatpush1.msra.mxu0 0.0
        %282 = vmatprep.subr.mxu0 0.0
        %283 = vmatpush1.msra.mxu0 0.0
        %284 = vmatprep.subr.mxu0 0.0
        %285 = vmatpush1.msra.mxu0 0.0
        %286 = vmatprep.subr.mxu0 0.0
        %287 = vmatpush1.msra.mxu0 0.0
        %288 = vmatprep.subr.mxu0 0.0
        %289 = vmatpush1.msra.mxu0 0.0
        %290 = vmatprep.subr.mxu0 0.0
        %291 = vmatpush1.msra.mxu0 0.0
        %292 = vmatprep.subr.mxu0 0.0
        %293 = vmatpush1.msra.mxu0 0.0
        %294 = vmatprep.subr.mxu0 0.0
        %295 = vmatpush1.msra.mxu0 0.0
        %296 = vmatprep.subr.mxu0 0.0
        %297 = vmatpush1.msra.mxu0 0.0
        %298 = vmatprep.subr.mxu0 0.0
        %299 = vmatpush1.msra.mxu0 0.0
        %300 = vmatprep.subr.mxu0 0.0
        %301 = vmatpush1.msra.mxu0 0.0
        %302 = vmatprep.subr.mxu0 0.0
        %303 = vmatpush1.msra.mxu0 0.0
        %304 = vmatprep.subr.mxu0 0.0
        %305 = vmatpush1.msra.mxu0 %v272
        %306 = vmatprep.subr.mxu0 0.0
        %307 = vmatpush2.msra.mxu0 0.0
        %308 = vmatprep.subr.mxu0 0.0
        %309 = vmatpush2.msra.mxu0 0.0
        %310 = vmatprep.subr.mxu0 0.0
        %311 = vmatpush2.msra.mxu0 0.0
        %312 = vmatprep.subr.mxu0 0.0
        %313 = vmatpush2.msra.mxu0 0.0
        %314 = vmatprep.subr.mxu0 0.0
        %315 = vmatpush2.msra.mxu0 0.0
        %316 = vmatprep.subr.mxu0 0.0
        %317 = vmatpush2.msra.mxu0 0.0
        %318 = vmatprep.subr.mxu0 0.0
        %319 = vmatpush2.msra.mxu0 0.0
        %320 = vmatprep.subr.mxu0 0.0
        %321 = vmatpush2.msra.mxu0 0.0
        %322 = vmatprep.subr.mxu0 0.0
        %323 = vmatpush2.msra.mxu0 0.0
        %324 = vmatprep.subr.mxu0 0.0
        %325 = vmatpush2.msra.mxu0 0.0
        %326 = vmatprep.subr.mxu0 0.0
        %327 = vmatpush2.msra.mxu0 0.0
        %328 = vmatprep.subr.mxu0 0.0
        %329 = vmatpush2.msra.mxu0 0.0
        %330 = vmatprep.subr.mxu0 0.0
        %331 = vmatpush2.msra.mxu0 0.0
        %332 = vmatprep.subr.mxu0 0.0
        %333 = vmatpush2.msra.mxu0 0.0
        %334 = vmatprep.subr.mxu0 0.0
        %335 = vmatpush2.msra.mxu0 0.0
        %336 = vmatprep.subr.mxu0 0.0
        %337 = vmatpush2.msra.mxu0 0.0
        %338 = vmatprep.mubr.f32.mxu0 0.0
        %339 = vmatmul.mubr.f32.gmra.mxu0 %v265
        %v340 = vpop.f32.mrf.mxu0
        %v341 = vadd.f32 %v256, %v340
        %v342 = vpop.f32.mrf.mxu0
        %343 = vmatprep.mubr.f32.mxu0 0.0
        %344 = vmatmul.mubr.f32.gmra.mxu0 %v268
        %v345 = vpop.f32.mrf.mxu0
        %v346 = vadd.f32 %v261, %v345
        %v347 = vpop.f32.mrf.mxu0
        %348 = vdwg.mxu0
        %v349 = vmul.f32 %v346, 0.125
        %v350 = vlaneseq
        %v351 = vshrl.u32 %v350, 7
        %v352 = vsub.s32 0, %v351
        %v353 = vrot.slane %v349, %v352
        %v354 = vsub.f32 %v341, %v353
        %v355 = vmul.f32 %v354, %v354
        %v356 = vrot.slane %v355, 4
        %v357 = vadd.f32 %v355, %v356
        %v358 = vrot.slane %v357, 2
        %v359 = vadd.f32 %v357, %v358
        %v360 = vrot.slane %v359, 1
        %v361 = vadd.f32 %v359, %v360
        %v362 = vmul.f32 %v361, 0.125
        %v363 = vadd.f32 %v362, 1e-06
        %v364 = vrsqrt.pop %v363
        %v365 = vmul.f32 %v354, %v364
        %v366 = vld [vmem:[%s3] sm:$0xff]
        %368 = vset.pattern.permute.xlu0 0
        %369 = vperm.xlu0 %368, %v366
        %v370 = vpop.permute.xlu0 %369
        %v372 = vmul.f32 %v365, %v370
        %v373 = vld [vmem:[%s4] sm:$0xff]
        %375 = vset.pattern.permute.xlu0 0
        %376 = vperm.xlu0 %375, %v373
        %v377 = vpop.permute.xlu0 %376
        %v379 = vadd.f32 %v372, %v377
        %380 = vst [vmem:[%s239] sm:$0xff] %v379
        %s381 = sand.u32 %s153, 1
        %s382 = scalar_lea.sflag [#allocation3], %s381
        %s383 = sand.u32 %s153, 1
        %s384 = smul.addr %s383, 8
        %s385 = scalar_lea.vmem [#allocation2], %s384
        // Predicated region
        $region41: #{tpu_custom_call.1} parent=39 // pred_check
          %p386 = pneg %p163
        $region42: #{tpu_custom_call.1} parent=39 // pred_check_branch
          %388 = sbr.rel (%p386) target = $region44
        $region43: #{tpu_custom_call.1} parent=39 // pred_region
          %s390 = ssub.s32 128, 128
          %391 = vsyncadd %s382, %s390
          %s392 = smul.addr %s23, 2
          %s393 = sadd.s32 %s24, %s392
          %s394 = smul.addr %s393, 128
          %s395 = scalar_lea.hbm %s5, %s394
          %s397 = sshll.u32 %s385, 4
          %s398 = int_to_ptr.vmem [resolvable:$true] %s397
          %400 = dma.vmem_to_hbm [thread:$0]  %s398, 128, %s395, %s382
        $region44: #{tpu_custom_call.1} parent=39 // pred_fallthru
          _
      $region40: #{tpu_custom_call.1} parent=5 // pred_fallthru
        _
      %p401 = scmp.le.s32.totalorder 2, %s14
      // Predicated region
      $region45: #{tpu_custom_call.1} parent=5 // pred_check
        %p402 = pneg %p401
      $region46: #{tpu_custom_call.1} parent=5 // pred_check_branch
        %404 = sbr.rel (%p402) target = $region48
      $region47: #{tpu_custom_call.1} parent=5 // pred_region
        %s405 = ssub.s32 %s14, 2
        // Predicated region
        $region49: #{tpu_custom_call.1} parent=47 // pred_check
          %p406 = pneg %p169
        $region50: #{tpu_custom_call.1} parent=47 // pred_check_branch
          %408 = sbr.rel (%p406) target = $region52
        $region51: #{tpu_custom_call.1} parent=47 // pred_region
          %s409 = sand.u32 %s154, 1
          %s410 = scalar_lea.sflag [#allocation3], %s409
          %s411 = sand.u32 %s154, 1
          %s412 = smul.addr %s411, 8
          %s413 = scalar_lea.vmem [#allocation2], %s412
          %414 = dma.done %s410, 128
        $region52: #{tpu_custom_call.1} parent=47 // pred_fallthru
          _
      $region48: #{tpu_custom_call.1} parent=5 // pred_fallthru
        _
    $region6: #{tpu_custom_call.1} parent=1 // loop_footer
      %s18 = sadd.s32 1, %s14
    $region7: #{tpu_custom_call.1} parent=1 // loop_footer_branch
      %13 = sbr.rel target = $region3
    $region8: #{tpu_custom_call.1} parent=1 // loop_exit
      _
    %415 = vsyncpa [#allocation3], 1
    %s416 = scalar_lea.sflag [#allocation3], 1
    %417 = vsyncpa %s416, 1

// kernel: tpu_custom_call.1
$region0: #{tpu_custom_call.1}
  #allocation0 [shape = 'u32[]', space=smem, size = 0x4, offset = 0x4, fixed_abs, tag = 'smem constant byte address 0x4 - core index']
  #allocation1 [shape = 'u32[144,128]{1,0:T(1,128)}', space=vmem, size = 0x12000, scoped, tag = 'internal scratch']
  %s0 = inlined_call_operand.vmem [shape: f32[2,4,256], index: 0, kind: input, shape index: {}]
  %s1 = inlined_call_operand.vmem [shape: f32[9,4], index: 1, kind: input, shape index: {}]
  %s2 = inlined_call_operand.vmem [shape: f32[9,1], index: 2, kind: input, shape index: {}]
  %s3 = inlined_call_operand.vmem [shape: f32[8,1], index: 3, kind: input, shape index: {}]
  %s4 = inlined_call_operand.vmem [shape: f32[8,1], index: 4, kind: input, shape index: {}]
  %s5 = inlined_call_operand.hbm [shape: f32[2,8,256], index: 5, kind: output, shape index: {}]
  %s6 = sld [smem:[#allocation0]]
  $region53: #{tpu_custom_call.1} parent=0
    _
  %s8 = ssub.s32 1, %s6
  %s9 = scalar_select 0, %s8, %s6
  $region1: #{tpu_custom_call.1} parent=0
    #allocation2 [shape = 'u8[8192]{0}', space=vmem, size = 0x2000, scoped, tag = 'output window, operand 0']
    #allocation3 [shape = 's32[2]{0}', space=sflag, size = 0x8, scoped, tag = 'scoped memory for tpu_custom_call.1']
    %10 = vsyncpa [#allocation3], 0
    %s11 = scalar_lea.sflag [#allocation3], 1
    %12 = vsyncpa %s11, 0
    loop: start=0, step=1, limit=6
    $region2: #{tpu_custom_call.1} parent=1 // loop_pre_header
      _
    $region3: #{tpu_custom_call.1} parent=1 // loop_header
      %s14 = sphi 0, %s18
      %p15 = scmp.ge.s32.totalorder %s14, 6
      %s21 = sphi 0, %s33
      %s22 = sphi 0, %s29
      %s23 = sphi 0, %s21
      %s24 = sphi 0, %s22
      %s25 = sphi 0, %s23
      %s26 = sphi 0, %s24
      %s38 = sphi 0, %s40
      %s41 = sphi 0, %s38
      %s42 = sphi 0, %s41
      %s58 = sphi 0, %s42
      %s62 = sphi 0, %s62
      %s64 = sphi 0, %s62
      %s65 = sphi 0, %s64
      %s79 = sphi 0, %s65
      %s83 = sphi 0, %s83
      %s85 = sphi 0, %s83
      %s86 = sphi 0, %s85
      %s100 = sphi 0, %s86
      %s104 = sphi 0, %s104
      %s106 = sphi 0, %s104
      %s107 = sphi 0, %s106
      %s121 = sphi 0, %s107
      %s125 = sphi 0, %s125
      %s127 = sphi 0, %s125
      %s128 = sphi 0, %s127
      %s142 = sphi 0, %s128
      %s150 = sphi 0, %s152
      %s153 = sphi 0, %s150
      %s154 = sphi 0, %s153
      %s170 = sphi 0, %s154
    $region4: #{tpu_custom_call.1} parent=1 // loop_header_branch
      %17 = sbr.rel (%p15) target = $region8
    $region5: #{tpu_custom_call.1} parent=1 // loop_body
      %s19 = ssub.s32 %s14, 1
      %s20 = ssub.s32 %s14, 2
      %s27 = sadd.s32 1, %s22
      %p28 = scmp.ge.s32.totalorder %s27, 2
      %s29 = scalar_select %p28, 0, %s27
      %s30 = sadd.s32 1, %s21
      %s31 = scalar_select %p28, %s30, %s21
      %p32 = scmp.ge.s32.totalorder %s31, 2
      %s33 = scalar_select %p32, 0, %s31
      %s34 = ssub.s32 %s21, %s33
      %s35 = ssub.s32 %s22, %s29
      %s36 = sor.u32 %s34, %s35
      %p37 = scmp.eq.s32.totalorder %s36, 0
      %s39 = sadd.s32 %s38, 1
      %s40 = scalar_select %p37, %s38, %s39
      %p43 = pneg %p37
      %p44 = scmp.eq.s32.totalorder %s14, 3
      %p45 = por %p43, %p44
      %p46 = scmp.ne.s32.totalorder %s38, %s41
      %p47 = scmp.eq.s32.totalorder %s14, 0
      %p48 = por %p46, %p47
      %p49 = scmp.ne.s32.totalorder %s38, %s41
      %p50 = scmp.eq.s32.totalorder %s19, 3
      %p51 = por %p49, %p50
      %p52 = scmp.ne.s32.totalorder %s41, %s42
      %p53 = scmp.eq.s32.totalorder %s19, 0
      %p54 = por %p52, %p53
      %p55 = scmp.ne.s32.totalorder %s41, %s42
      %p56 = scmp.eq.s32.totalorder %s20, 3
      %p57 = por %p55, %p56
      %p59 = scmp.ne.s32.totalorder %s42, %s58
      %p60 = scmp.eq.s32.totalorder %s20, 0
      %p61 = por %p59, %p60
      %s63 = sadd.s32 %s62, 1
      %p66 = scmp.eq.s32.totalorder %s14, 3
      %p67 = scmp.ne.s32.totalorder %s62, %s64
      %p68 = scmp.eq.s32.totalorder %s14, 0
      %p69 = por %p67, %p68
      %p70 = scmp.ne.s32.totalorder %s62, %s64
      %p71 = scmp.eq.s32.totalorder %s19, 3
      %p72 = por %p70, %p71
      %p73 = scmp.ne.s32.totalorder %s64, %s65
      %p74 = scmp.eq.s32.totalorder %s19, 0
      %p75 = por %p73, %p74
      %p76 = scmp.ne.s32.totalorder %s64, %s65
      %p77 = scmp.eq.s32.totalorder %s20, 3
      %p78 = por %p76, %p77
      %p80 = scmp.ne.s32.totalorder %s65, %s79
      %p81 = scmp.eq.s32.totalorder %s20, 0
      %p82 = por %p80, %p81
      %s84 = sadd.s32 %s83, 1
      %p87 = scmp.eq.s32.totalorder %s14, 3
      %p88 = scmp.ne.s32.totalorder %s83, %s85
      %p89 = scmp.eq.s32.totalorder %s14, 0
      %p90 = por %p88, %p89
      %p91 = scmp.ne.s32.totalorder %s83, %s85
      %p92 = scmp.eq.s32.totalorder %s19, 3
      %p93 = por %p91, %p92
      %p94 = scmp.ne.s32.totalorder %s85, %s86
      %p95 = scmp.eq.s32.totalorder %s19, 0
      %p96 = por %p94, %p95
      %p97 = scmp.ne.s32.totalorder %s85, %s86
      %p98 = scmp.eq.s32.totalorder %s20, 3
      %p99 = por %p97, %p98
      %p101 = scmp.ne.s32.totalorder %s86, %s100
      %p102 = scmp.eq.s32.totalorder %s20, 0
      %p103 = por %p101, %p102
      %s105 = sadd.s32 %s104, 1
      %p108 = scmp.eq.s32.totalorder %s14, 3
      %p109 = scmp.ne.s32.totalorder %s104, %s106
      %p110 = scmp.eq.s32.totalorder %s14, 0
      %p111 = por %p109, %p110
      %p112 = scmp.ne.s32.totalorder %s104, %s106
      %p113 = scmp.eq.s32.totalorder %s19, 3
      %p114 = por %p112, %p113
      %p115 = scmp.ne.s32.totalorder %s106, %s107
      %p116 = scmp.eq.s32.totalorder %s19, 0
      %p117 = por %p115, %p116
      %p118 = scmp.ne.s32.totalorder %s106, %s107
      %p119 = scmp.eq.s32.totalorder %s20, 3
      %p120 = por %p118, %p119
      %p122 = scmp.ne.s32.totalorder %s107, %s121
      %p123 = scmp.eq.s32.totalorder %s20, 0
      %p124 = por %p122, %p123
      %s126 = sadd.s32 %s125, 1
      %p129 = scmp.eq.s32.totalorder %s14, 3
      %p130 = scmp.ne.s32.totalorder %s125, %s127
      %p131 = scmp.eq.s32.totalorder %s14, 0
      %p132 = por %p130, %p131
      %p133 = scmp.ne.s32.totalorder %s125, %s127
      %p134 = scmp.eq.s32.totalorder %s19, 3
      %p135 = por %p133, %p134
      %p136 = scmp.ne.s32.totalorder %s127, %s128
      %p137 = scmp.eq.s32.totalorder %s19, 0
      %p138 = por %p136, %p137
      %p139 = scmp.ne.s32.totalorder %s127, %s128
      %p140 = scmp.eq.s32.totalorder %s20, 3
      %p141 = por %p139, %p140
      %p143 = scmp.ne.s32.totalorder %s128, %s142
      %p144 = scmp.eq.s32.totalorder %s20, 0
      %p145 = por %p143, %p144
      %s146 = ssub.s32 %s21, %s33
      %s147 = ssub.s32 %s22, %s29
      %s148 = sor.u32 %s146, %s147
      %p149 = scmp.eq.s32.totalorder %s148, 0
      %s151 = sadd.s32 %s150, 1
      %s152 = scalar_select %p149, %s150, %s151
      %p155 = pneg %p149
      %p156 = scmp.eq.s32.totalorder %s14, 3
      %p157 = por %p155, %p156
      %p158 = scmp.ne.s32.totalorder %s150, %s153
      %p159 = scmp.eq.s32.totalorder %s14, 0
      %p160 = por %p158, %p159
      %p161 = scmp.ne.s32.totalorder %s150, %s153
      %p162 = scmp.eq.s32.totalorder %s19, 3
      %p163 = por %p161, %p162
      %p164 = scmp.ne.s32.totalorder %s153, %s154
      %p165 = scmp.eq.s32.totalorder %s19, 0
      %p166 = por %p164, %p165
      %p167 = scmp.ne.s32.totalorder %s153, %s154
      %p168 = scmp.eq.s32.totalorder %s20, 3
      %p169 = por %p167, %p168
      %p171 = scmp.ne.s32.totalorder %s154, %s170
      %p172 = scmp.eq.s32.totalorder %s20, 0
      %p173 = por %p171, %p172
      %p174 = scmp.le.s32.totalorder 1, %s14
      %p175 = scmp.lt.s32.totalorder %s14, 5
      %p176 = pnand %p174, %p175
      %p177 = pneg %p176
      // Predicated region
      $region9: #{tpu_custom_call.1} parent=5 // pred_check
        _
      $region10: #{tpu_custom_call.1} parent=5 // pred_check_branch
        %179 = sbr.rel (%p176) target = $region12
      $region11: #{tpu_custom_call.1} parent=5 // pred_region
        %s180 = ssub.s32 %s14, 1
        // Predicated region
        $region13: #{tpu_custom_call.1} parent=11 // pred_check
          %p181 = pneg %p75
        $region14: #{tpu_custom_call.1} parent=11 // pred_check_branch
          %183 = sbr.rel (%p181) target = $region16
        $region15: #{tpu_custom_call.1} parent=11 // pred_region
          _
        $region16: #{tpu_custom_call.1} parent=11 // pred_fallthru
          _
        // Predicated region
        $region17: #{tpu_custom_call.1} parent=11 // pred_check
          %p184 = pneg %p96
        $region18: #{tpu_custom_call.1} parent=11 // pred_check_branch
          %186 = sbr.rel (%p184) target = $region20
        $region19: #{tpu_custom_call.1} parent=11 // pred_region
          _
        $region20: #{tpu_custom_call.1} parent=11 // pred_fallthru
          _
        // Predicated region
        $region21: #{tpu_custom_call.1} parent=11 // pred_check
          %p187 = pneg %p117
        $region22: #{tpu_custom_call.1} parent=11 // pred_check_branch
          %189 = sbr.rel (%p187) target = $region24
        $region23: #{tpu_custom_call.1} parent=11 // pred_region
          _
        $region24: #{tpu_custom_call.1} parent=11 // pred_fallthru
          _
        // Predicated region
        $region25: #{tpu_custom_call.1} parent=11 // pred_check
          %p190 = pneg %p138
        $region26: #{tpu_custom_call.1} parent=11 // pred_check_branch
          %192 = sbr.rel (%p190) target = $region28
        $region27: #{tpu_custom_call.1} parent=11 // pred_region
          _
        $region28: #{tpu_custom_call.1} parent=11 // pred_fallthru
          _
      $region12: #{tpu_custom_call.1} parent=5 // pred_fallthru
        _
      %p193 = scmp.lt.s32.totalorder %s14, 4
      // Predicated region
      $region29: #{tpu_custom_call.1} parent=5 // pred_check
        %p194 = pneg %p193
      $region30: #{tpu_custom_call.1} parent=5 // pred_check_branch
        %196 = sbr.rel (%p194) target = $region32
      $region31: #{tpu_custom_call.1} parent=5 // pred_region
        // Predicated region
        $region33: #{tpu_custom_call.1} parent=31 // pred_check
          %p197 = pneg %p48
        $region34: #{tpu_custom_call.1} parent=31 // pred_check_branch
          %199 = sbr.rel (%p197) target = $region36
        $region35: #{tpu_custom_call.1} parent=31 // pred_region
          %p200 = scmp.lt.s32.totalorder %s21, 1
          %s201 = scalar_select %p200, %s21, 1
          %p202 = scmp.lt.s32.totalorder %s22, 1
          %s203 = scalar_select %p202, %s22, 1
          %s204 = smul.addr %s201, 2
          %s205 = sadd.s32 %s203, %s204
          %s206 = smul.addr %s205, 4
          %s207 = scalar_lea.vmem %s0, %s206
        $region36: #{tpu_custom_call.1} parent=31 // pred_fallthru
          _
      $region32: #{tpu_custom_call.1} parent=5 // pred_fallthru
        _
      %p208 = scmp.le.s32.totalorder 1, %s14
      %p209 = scmp.lt.s32.totalorder %s14, 5
      %p210 = pnand %p208, %p209
      %p211 = pneg %p210
      // Predicated region
      $region37: #{tpu_custom_call.1} parent=5 // pred_check
        _
      $region38: #{tpu_custom_call.1} parent=5 // pred_check_branch
        %213 = sbr.rel (%p210) target = $region40
      $region39: #{tpu_custom_call.1} parent=5 // pred_region
        %s214 = ssub.s32 %s14, 1
        %p215 = scmp.lt.s32.totalorder %s23, 1
        %s216 = scalar_select %p215, %s23, 1
        %p217 = scmp.lt.s32.totalorder %s24, 1
        %s218 = scalar_select %p217, %s24, 1
        %s219 = smul.addr %s216, 2
        %s220 = sadd.s32 %s218, %s219
        %s221 = smul.addr %s220, 4
        %s222 = scalar_lea.vmem %s0, %s221
        %p223 = pneg %p54
        %p224 = pneg %p51
        %p225 = pneg %p75
        %p226 = pneg %p72
        %p227 = pneg %p96
        %p228 = pneg %p93
        %p229 = pneg %p117
        %p230 = pneg %p114
        %p231 = pneg %p138
        %p232 = pneg %p135
        %p233 = pneg %p166
        %p234 = pneg %p163
        %s235 = sand.u32 %s153, 1
        %s236 = scalar_lea.sflag [#allocation3], %s235
        %s237 = sand.u32 %s153, 1
        %s238 = smul.addr %s237, 8
        %s239 = scalar_lea.vmem [#allocation2], %s238
        %p240 = scmp.lt.s32.totalorder %s23, 1
        %s241 = scalar_select %p240, %s23, 1
        %p242 = scmp.lt.s32.totalorder %s24, 1
        %s243 = scalar_select %p242, %s24, 1
        %s244 = smul.addr %s241, 2
        %s245 = sadd.s32 %s243, %s244
        %s246 = smul.addr %s245, 4
        %s247 = scalar_lea.vmem %s0, %s246
        %v248 = vld [vmem:[%s247] sm:$0xf]
        %v249 = vld [vmem:[%s1] sm:$0xff]
        %v250 = vld [vmem:[%s1 + $0x8] sm:$0x1]
        %v251 = vld [vmem:[%s2] sm:$0xff]
        %v252 = vld [vmem:[%s2 + $0x8] sm:$0x1]
        %254 = vset.pattern.permute.xlu0 0
        %255 = vperm.xlu0 %254, %v251
        %v256 = vpop.permute.xlu0 %255
        %259 = vset.pattern.permute.xlu0 0
        %260 = vperm.xlu0 %259, %v252
        %v261 = vpop.permute.xlu0 %260
        %vm263 = vcmask 31744
        %v265 = vsel %vm263, %v249, 0
        %v268 = vsel %vm263, %v250, 0
        %vm270 = vcmask 1043456
        %v272 = vsel %vm270, %v248, 0
        %274 = vmatprep.subr.mxu0 0.0
        %275 = vmatpush1.msra.mxu0 0.0
        %276 = vmatprep.subr.mxu0 0.0
        %277 = vmatpush1.msra.mxu0 0.0
        %278 = vmatprep.subr.mxu0 0.0
        %279 = vmatpush1.msra.mxu0 0.0
        %280 = vmatprep.subr.mxu0 0.0
        %281 = vmatpush1.msra.mxu0 0.0
        %282 = vmatprep.subr.mxu0 0.0
        %283 = vmatpush1.msra.mxu0 0.0
        %284 = vmatprep.subr.mxu0 0.0
        %285 = vmatpush1.msra.mxu0 0.0
        %286 = vmatprep.subr.mxu0 0.0
        %287 = vmatpush1.msra.mxu0 0.0
        %288 = vmatprep.subr.mxu0 0.0
        %289 = vmatpush1.msra.mxu0 0.0
        %290 = vmatprep.subr.mxu0 0.0
        %291 = vmatpush1.msra.mxu0 0.0
        %292 = vmatprep.subr.mxu0 0.0
        %293 = vmatpush1.msra.mxu0 0.0
        %294 = vmatprep.subr.mxu0 0.0
        %295 = vmatpush1.msra.mxu0 0.0
        %296 = vmatprep.subr.mxu0 0.0
        %297 = vmatpush1.msra.mxu0 0.0
        %298 = vmatprep.subr.mxu0 0.0
        %299 = vmatpush1.msra.mxu0 0.0
        %300 = vmatprep.subr.mxu0 0.0
        %301 = vmatpush1.msra.mxu0 0.0
        %302 = vmatprep.subr.mxu0 0.0
        %303 = vmatpush1.msra.mxu0 0.0
        %304 = vmatprep.subr.mxu0 0.0
        %305 = vmatpush1.msra.mxu0 %v272
        %306 = vmatprep.subr.mxu0 0.0
        %307 = vmatpush2.msra.mxu0 0.0
        %308 = vmatprep.subr.mxu0 0.0
        %309 = vmatpush2.msra.mxu0 0.0
        %310 = vmatprep.subr.mxu0 0.0
        %311 = vmatpush2.msra.mxu0 0.0
        %312 = vmatprep.subr.mxu0 0.0
        %313 = vmatpush2.msra.mxu0 0.0
        %314 = vmatprep.subr.mxu0 0.0
        %315 = vmatpush2.msra.mxu0 0.0
        %316 = vmatprep.subr.mxu0 0.0
        %317 = vmatpush2.msra.mxu0 0.0
        %318 = vmatprep.subr.mxu0 0.0
        %319 = vmatpush2.msra.mxu0 0.0
        %320 = vmatprep.subr.mxu0 0.0
        %321 = vmatpush2.msra.mxu0 0.0
        %322 = vmatprep.subr.mxu0 0.0
        %323 = vmatpush2.msra.mxu0 0.0
        %324 = vmatprep.subr.mxu0 0.0
        %325 = vmatpush2.msra.mxu0 0.0
        %326 = vmatprep.subr.mxu0 0.0
        %327 = vmatpush2.msra.mxu0 0.0
        %328 = vmatprep.subr.mxu0 0.0
        %329 = vmatpush2.msra.mxu0 0.0
        %330 = vmatprep.subr.mxu0 0.0
        %331 = vmatpush2.msra.mxu0 0.0
        %332 = vmatprep.subr.mxu0 0.0
        %333 = vmatpush2.msra.mxu0 0.0
        %334 = vmatprep.subr.mxu0 0.0
        %335 = vmatpush2.msra.mxu0 0.0
        %336 = vmatprep.subr.mxu0 0.0
        %337 = vmatpush2.msra.mxu0 0.0
        %338 = vmatprep.mubr.f32.mxu0 0.0
        %339 = vmatmul.mubr.f32.gmra.mxu0 %v265
        %v340 = vpop.f32.mrf.mxu0
        %v341 = vadd.f32 %v256, %v340
        %v342 = vpop.f32.mrf.mxu0
        %343 = vmatprep.mubr.f32.mxu0 0.0
        %344 = vmatmul.mubr.f32.gmra.mxu0 %v268
        %v345 = vpop.f32.mrf.mxu0
        %v346 = vadd.f32 %v261, %v345
        %v347 = vpop.f32.mrf.mxu0
        %348 = vdwg.mxu0
        %v349 = vmul.f32 %v346, 0.125
        %v350 = vlaneseq
        %v351 = vshrl.u32 %v350, 7
        %v352 = vsub.s32 0, %v351
        %v353 = vrot.slane %v349, %v352
        %v354 = vsub.f32 %v341, %v353
        %v355 = vmul.f32 %v354, %v354
        %v356 = vrot.slane %v355, 4
        %v357 = vadd.f32 %v355, %v356
        %v358 = vrot.slane %v357, 2
        %v359 = vadd.f32 %v357, %v358
        %v360 = vrot.slane %v359, 1
        %v361 = vadd.f32 %v359, %v360
        %v362 = vmul.f32 %v361, 0.125
        %v363 = vadd.f32 %v362, 1e-06
        %v364 = vrsqrt.pop %v363
        %v365 = vmul.f32 %v354, %v364
        %v366 = vld [vmem:[%s3] sm:$0xff]
        %368 = vset.pattern.permute.xlu0 0
        %369 = vperm.xlu0 %368, %v366
        %v370 = vpop.permute.xlu0 %369
        %v372 = vmul.f32 %v365, %v370
        %v373 = vld [vmem:[%s4] sm:$0xff]
        %375 = vset.pattern.permute.xlu0 0
        %376 = vperm.xlu0 %375, %v373
        %v377 = vpop.permute.xlu0 %376
        %v379 = vadd.f32 %v372, %v377
        %380 = vst [vmem:[%s239] sm:$0xff] %v379
        %s381 = sand.u32 %s153, 1
        %s382 = scalar_lea.sflag [#allocation3], %s381
        %s383 = sand.u32 %s153, 1
        %s384 = smul.addr %s383, 8
        %s385 = scalar_lea.vmem [#allocation2], %s384
        // Predicated region
        $region41: #{tpu_custom_call.1} parent=39 // pred_check
          %p386 = pneg %p163
        $region42: #{tpu_custom_call.1} parent=39 // pred_check_branch
          %388 = sbr.rel (%p386) target = $region44
        $region43: #{tpu_custom_call.1} parent=39 // pred_region
          %s390 = ssub.s32 128, 128
          %391 = vsyncadd %s382, %s390
          %s392 = smul.addr %s23, 2
          %s393 = sadd.s32 %s24, %s392
          %s394 = smul.addr %s393, 128
          %s395 = scalar_lea.hbm %s5, %s394
          %s397 = sshll.u32 %s385, 4
          %s398 = int_to_ptr.vmem [resolvable:$true] %s397
          %400 = dma.vmem_to_hbm [thread:$0]  %s398, 128, %s395, %s382
        $region44: #{tpu_custom_call.1} parent=39 // pred_fallthru
          _
      $region40: #{tpu_custom_call.1} parent=5 // pred_fallthru
        _
      %p401 = scmp.le.s32.totalorder 2, %s14
      // Predicated region
      $region45: #{tpu_custom_call.1} parent=5 // pred_check
        %p402 = pneg %p401
      $region46: #{tpu_custom_call.1} parent=5 // pred_check_branch
        %404 = sbr.rel (%p402) target = $region48
      $region47: #{tpu_custom_call.1} parent=5 // pred_region
        %s405 = ssub.s32 %s14, 2
        // Predicated region
        $region49: #{tpu_custom_call.1} parent=47 // pred_check
          %p406 = pneg %p169
        $region50: #{tpu_custom_call.1} parent=47 // pred_check_branch
          %408 = sbr.rel (%p406) target = $region52
        $region51: #{tpu_custom_call.1} parent=47 // pred_region
          %s409 = sand.u32 %s154, 1
          %s410 = scalar_lea.sflag [#allocation3], %s409
          %s411 = sand.u32 %s154, 1
          %s412 = smul.addr %s411, 8
          %s413 = scalar_lea.vmem [#allocation2], %s412
          %414 = dma.done %s410, 128
        $region52: #{tpu_custom_call.1} parent=47 // pred_fallthru
          _
      $region48: #{tpu_custom_call.1} parent=5 // pred_fallthru
        _
    $region6: #{tpu_custom_call.1} parent=1 // loop_footer
      %s18 = sadd.s32 1, %s14
    $region7: #{tpu_custom_call.1} parent=1 // loop_footer_branch
      %13 = sbr.rel target = $region3
    $region8: #{tpu_custom_call.1} parent=1 // loop_exit
      _
    %415 = vsyncpa [#allocation3], 1
    %s416 = scalar_lea.sflag [#allocation3], 1
    %417 = vsyncpa %s416, 1

</llo_original>
